<compile_context>
chip_gen: v7x
topology: tpu7x:2x2x1
jax: 0.10.0
libtpu: 0.0.40
codegen_flags: <defaults>
</compile_context>

<pallas_src>
import random

import jax
import jax.numpy as jnp
from jax.experimental import pallas as pl
from jax.experimental.pallas import tpu as pltpu

MAX_MIDDLE = 3        # upper bound of random.randint(0, 3) in the PyTorch module
MAX_BLOCK_N = 4096    # row tile: multiple of 8 sublanes, ~5.5 MiB of VMEM at these dims
LANE = 128            # TPU lane width: pad feature dims to multiples of this


def _round_up(x: int, m: int) -> int:
    return ((x + m - 1) // m) * m


def _dynamic_net_kernel(n_ref, x_ref, w1_ref, b1_ref, w2_ref, b2_ref,
                        w3_ref, b3_ref, o_ref, h_ref):
    """One row-tile of the fused DynamicNet forward pass.

    h_ref is a bf16 VMEM scratch holding the hidden activations between layers.
    """
    n = n_ref[0]  # runtime middle-layer repeat count (0..MAX_MIDDLE), lives in SMEM

    # Hoist all weight / bias loads once (outside the repeat loop).
    w1 = w1_ref[...]
    b1 = b1_ref[...]
    w2 = w2_ref[...]
    b2 = b2_ref[...]
    w3 = w3_ref[...]
    b3 = b3_ref[...]

    # input_linear + clamp(min=0): bf16 MXU matmul, f32 accumulate / activation,
    # single cast to bf16 when storing into the scratch.
    x = x_ref[...].astype(w1.dtype)
    h_ref[...] = jnp.maximum(
        jnp.dot(x, w1, preferred_element_type=jnp.float32) + b1,
        0.0).astype(h_ref.dtype)

    # middle_linear reused n times: statically unrolled to MAX_MIDDLE, each repeat
    # gated on the runtime scalar so a single compile covers every n in 0..3 and
    # skipped repeats cost nothing at runtime.  Scratch is bf16, so the dot
    # consumes it directly (no per-repeat astype on reload).
    for i in range(MAX_MIDDLE):
        @pl.when(i < n)
        def _():
            h_ref[...] = jnp.maximum(
                jnp.dot(h_ref[...], w2, preferred_element_type=jnp.float32) + b2,
                0.0).astype(h_ref.dtype)

    # output_linear (no activation).  D_out is padded to 128 lanes, so this store
    # is a full-lane (unmasked) writeback.
    y = jnp.dot(h_ref[...], w3, preferred_element_type=jnp.float32) + b3
    o_ref[...] = y.astype(o_ref.dtype)


@jax.jit
def _pallas_forward(n_arr, x, w1, b1, w2, b2, w3, b3):
    n_rows, d_in = x.shape            # x already padded to a multiple of the tile
    h_pad = w1.shape[1]               # hidden dim, padded to a multiple of 128
    d_out_pad = w3.shape[1]           # output dim, padded to a multiple of 128
    block_n = min(MAX_BLOCK_N, n_rows)
    grid = (n_rows // block_n,)

    # Clamp the runtime repeat count so out-of-range values can't silently
    # diverge from the module's 0..3 semantics.
    n_arr = jnp.clip(n_arr, 0, MAX_MIDDLE).astype(jnp.int32)

    def resident(arr):
        # Whole (small) weight/bias array, same block every grid step -> stays
        # VMEM-resident across the row grid.
        return pl.BlockSpec(arr.shape, lambda i, n_ref: (0, 0))

    grid_spec = pltpu.PrefetchScalarGridSpec(
        num_scalar_prefetch=1,        # n_middle -> SMEM, passed to index_maps/kernel
        grid=grid,
        in_specs=[
            pl.BlockSpec((block_n, d_in), lambda i, n_ref: (i, 0)),  # x row tile
            resident(w1), resident(b1),
            resident(w2), resident(b2),
            resident(w3), resident(b3),
        ],
        # Block only on N; full (128-padded) D_out per block -> lane-dense stores.
        out_specs=pl.BlockSpec((block_n, d_out_pad), lambda i, n_ref: (i, 0)),
        # bf16 hidden scratch: half the scratch traffic of f32 per middle repeat.
        scratch_shapes=[pltpu.VMEM((block_n, h_pad), jnp.bfloat16)],
    )

    return pl.pallas_call(
        _dynamic_net_kernel,
        out_shape=jax.ShapeDtypeStruct((n_rows, d_out_pad), x.dtype),
        grid_spec=grid_spec,
        compiler_params=pltpu.CompilerParams(
            # Batch rows are independent -> pipelined HBM<->VMEM DMA.
            dimension_semantics=("parallel",),
            # Explicit cap so the larger row tile also fits v5e's 16 MiB scoped
            # default; well under v7x's 64 MiB physical VMEM.
            vmem_limit_bytes=32 * 1024 * 1024,
        ),
    )(n_arr, x, w1, b1, w2, b2, w3, b3)


def dynamic_net_forward(x, params, n_middle, d_out):
    """DynamicNet forward with `n_middle` middle-layer repeats (runtime value).

    `n_middle` may be a Python int or a device int32 scalar/array (avoids a
    per-call host->device transfer if the caller already has it on device).
    """
    w1, b1, w2, b2, w3, b3 = params
    n = x.shape[0]
    block_n = min(MAX_BLOCK_N, _round_up(n, 8))
    n_pad = _round_up(n, block_n)
    if n_pad != n:
        x = jnp.pad(x, ((0, n_pad - n), (0, 0)))
    n_arr = jnp.asarray(n_middle, dtype=jnp.int32).reshape((1,))
    y = _pallas_forward(n_arr, x, w1, b1, w2, b2, w3, b3)
    return y[:n, :d_out]


def init_params(key, d_in, h, d_out, weight_dtype=jnp.bfloat16):
    """PyTorch-style uniform(-1/sqrt(fan_in), 1/sqrt(fan_in)) init.

    Weights are stored transposed to (in_features, out_features), zero-padded so
    the hidden and output feature dims are multiples of 128 lanes, and cast to
    bf16 for the MXU; biases are (1, out_features_padded) in f32.  The zero
    padding is exact: padded hidden slots stay 0 through ReLU and contribute
    nothing, padded output columns are exactly 0 and get sliced off.
    """
    h_pad = _round_up(h, LANE)
    d_out_pad = _round_up(d_out, LANE)
    ks = jax.random.split(key, 6)

    def lin(kw, kb, fan_in, fan_out, fan_in_pad, fan_out_pad):
        bound = 1.0 / (fan_in ** 0.5)
        w = jax.random.uniform(kw, (fan_in, fan_out), jnp.float32, -bound, bound)
        b = jax.random.uniform(kb, (1, fan_out), jnp.float32, -bound, bound)
        w = jnp.pad(w, ((0, fan_in_pad - fan_in), (0, fan_out_pad - fan_out)))
        b = jnp.pad(b, ((0, 0), (0, fan_out_pad - fan_out)))
        return w.astype(weight_dtype), b

    w1, b1 = lin(ks[0], ks[1], d_in, h, d_in, h_pad)       # input_linear
    w2, b2 = lin(ks[2], ks[3], h, h, h_pad, h_pad)          # middle_linear
    w3, b3 = lin(ks[4], ks[5], h, d_out, h_pad, d_out_pad)  # output_linear
    return (w1, b1, w2, b2, w3, b3)


def reference_forward(x, params, n_middle, d_out):
    """Pure-JAX reference (same bf16-in / f32-accumulate recipe as the kernel)."""
    w1, b1, w2, b2, w3, b3 = params

    def lin(v, w, b):
        return jnp.dot(v.astype(w.dtype), w,
                       preferred_element_type=jnp.float32) + b

    h = jnp.maximum(lin(x, w1, b1), 0.0)
    for _ in range(n_middle):
        h = jnp.maximum(lin(h, w2, b2), 0.0)
    return lin(h, w3, b3)[:, :d_out]


if __name__ == "__main__":
    # Small shapes consistent with the module: x is (N, D_in).
    N, D_in, H, D_out = 8, 16, 32, 4

    key = jax.random.PRNGKey(0)
    k_x, k_p = jax.random.split(key)
    x = jax.random.normal(k_x, (N, D_in), dtype=jnp.float32)
    params = init_params(k_p, D_in, H, D_out)

    # All repeat counts 0..3 run through the SAME compiled kernel (n_middle is a
    # runtime SMEM scalar, not a trace constant).
    for n_middle in range(MAX_MIDDLE + 1):
        y = jax.block_until_ready(dynamic_net_forward(x, params, n_middle, D_out))
        y_ref = reference_forward(x, params, n_middle, D_out)
        assert y.shape == (N, D_out)
        assert jnp.allclose(y, y_ref, atol=1e-2, rtol=1e-2), f"mismatch n={n_middle}"

    # Mirror the module's per-forward random.randint(0, 3) dynamic control flow,
    # passing n as a device scalar (no per-call host->device copy of the count).
    random.seed(0)
    n_dev = jnp.asarray(random.randint(0, MAX_MIDDLE), dtype=jnp.int32)
    y = jax.block_until_ready(dynamic_net_forward(x, params, n_dev, D_out))
    assert jnp.allclose(y, reference_forward(x, params, int(n_dev), D_out),
                        atol=1e-2, rtol=1e-2), "mismatch vs reference"

    print("KERNEL_OK")
</pallas_src>

<mosaic_0001>
module attributes {stable_mosaic.version = 11 : i64} {
  func.func @_dynamic_net_kernel(%arg0: i32, %arg1: memref<1xi32, #tpu.memory_space<smem>>, %arg2: memref<8x16xf32, #tpu.memory_space<vmem>>, %arg3: memref<16x128xbf16, #tpu.memory_space<vmem>>, %arg4: memref<1x128xf32, #tpu.memory_space<vmem>>, %arg5: memref<128x128xbf16, #tpu.memory_space<vmem>>, %arg6: memref<1x128xf32, #tpu.memory_space<vmem>>, %arg7: memref<128x128xbf16, #tpu.memory_space<vmem>>, %arg8: memref<1x128xf32, #tpu.memory_space<vmem>>, %arg9: memref<8x128xf32, #tpu.memory_space<vmem>>, %arg10: memref<8x128xbf16, #tpu.memory_space<vmem>>) attributes {dimension_semantics = [#tpu.dimension_semantics<parallel>], iteration_bounds = array<i64: 1>, scalar_prefetch = 1 : i64, scratch_operands = 1 : i64, tpu.core_type = #tpu.core_type<tc>, window_params = [{transform_indices = @transform_0, window_bounds = array<i64: 8, 16>}, {pipeline_mode = #tpu.pipeline_mode<synchronous>, transform_indices = @transform_1, window_bounds = array<i64: 16, 128>}, {pipeline_mode = #tpu.pipeline_mode<synchronous>, transform_indices = @transform_2, window_bounds = array<i64: 1, 128>}, {pipeline_mode = #tpu.pipeline_mode<synchronous>, transform_indices = @transform_3, window_bounds = array<i64: 128, 128>}, {pipeline_mode = #tpu.pipeline_mode<synchronous>, transform_indices = @transform_4, window_bounds = array<i64: 1, 128>}, {pipeline_mode = #tpu.pipeline_mode<synchronous>, transform_indices = @transform_5, window_bounds = array<i64: 128, 128>}, {pipeline_mode = #tpu.pipeline_mode<synchronous>, transform_indices = @transform_6, window_bounds = array<i64: 1, 128>}, {transform_indices = @transform_7, window_bounds = array<i64: 8, 128>}]} {
    %c0 = arith.constant 0 : index
    %0 = memref.load %arg1[%c0] : memref<1xi32, #tpu.memory_space<smem>>
    %c0_0 = arith.constant 0 : index
    %c0_1 = arith.constant 0 : index
    %1 = vector.load %arg3[%c0_0, %c0_1] : memref<16x128xbf16, #tpu.memory_space<vmem>>, vector<16x128xbf16>
    %c0_2 = arith.constant 0 : index
    %c0_3 = arith.constant 0 : index
    %2 = vector.load %arg4[%c0_2, %c0_3] : memref<1x128xf32, #tpu.memory_space<vmem>>, vector<1x128xf32>
    %c0_4 = arith.constant 0 : index
    %c0_5 = arith.constant 0 : index
    %3 = vector.load %arg5[%c0_4, %c0_5] : memref<128x128xbf16, #tpu.memory_space<vmem>>, vector<128x128xbf16>
    %c0_6 = arith.constant 0 : index
    %c0_7 = arith.constant 0 : index
    %4 = vector.load %arg6[%c0_6, %c0_7] : memref<1x128xf32, #tpu.memory_space<vmem>>, vector<1x128xf32>
    %c0_8 = arith.constant 0 : index
    %c0_9 = arith.constant 0 : index
    %5 = vector.load %arg7[%c0_8, %c0_9] : memref<128x128xbf16, #tpu.memory_space<vmem>>, vector<128x128xbf16>
    %c0_10 = arith.constant 0 : index
    %c0_11 = arith.constant 0 : index
    %6 = vector.load %arg8[%c0_10, %c0_11] : memref<1x128xf32, #tpu.memory_space<vmem>>, vector<1x128xf32>
    %c0_12 = arith.constant 0 : index
    %c0_13 = arith.constant 0 : index
    %7 = vector.load %arg2[%c0_12, %c0_13] : memref<8x16xf32, #tpu.memory_space<vmem>>, vector<8x16xf32>
    %8 = arith.truncf %7 : vector<8x16xf32> to vector<8x16xbf16>
    %cst = arith.constant dense<0.000000e+00> : vector<8x128xf32>
    %9 = tpu.matmul %8, %1, %cst {dimension_numbers = #tpu.dot_dimension_numbers<[1], [0], [0], [1], [0, 0, 1, 1], [], []>} : vector<8x16xbf16>, vector<16x128xbf16>, vector<8x128xf32> -> vector<8x128xf32>
    %10 = vector.broadcast %2 : vector<1x128xf32> to vector<8x128xf32>
    %11 = arith.addf %9, %10 : vector<8x128xf32>
    %cst_14 = arith.constant 0.000000e+00 : f32
    %12 = vector.broadcast %cst_14 : f32 to vector<8x128xf32>
    %13 = arith.maximumf %11, %12 : vector<8x128xf32>
    %14 = arith.truncf %13 : vector<8x128xf32> to vector<8x128xbf16>
    %c0_15 = arith.constant 0 : index
    %c0_16 = arith.constant 0 : index
    %15 = vector.load %arg10[%c0_15, %c0_16] : memref<8x128xbf16, #tpu.memory_space<vmem>>, vector<8x128xbf16>
    tpu.vector_store %arg10[%c0_15, %c0_16], %14 {strides = array<i32>} : memref<8x128xbf16, #tpu.memory_space<vmem>>, vector<8x128xbf16>,
    %c0_i32 = arith.constant 0 : i32
    %16 = arith.cmpi sgt, %0, %c0_i32 : i32
    %17 = arith.extui %16 : i1 to i32
    %c0_i32_17 = arith.constant 0 : i32
    %18 = arith.cmpi ne, %17, %c0_i32_17 : i32
    scf.if %18 {
      %c0_25 = arith.constant 0 : index
      %c0_26 = arith.constant 0 : index
      %30 = vector.load %arg10[%c0_25, %c0_26] : memref<8x128xbf16, #tpu.memory_space<vmem>>, vector<8x128xbf16>
      %cst_27 = arith.constant dense<0.000000e+00> : vector<8x128xf32>
      %31 = tpu.matmul %30, %3, %cst_27 {dimension_numbers = #tpu.dot_dimension_numbers<[1], [0], [0], [1], [0, 0, 1, 1], [], []>} : vector<8x128xbf16>, vector<128x128xbf16>, vector<8x128xf32> -> vector<8x128xf32>
      %32 = vector.broadcast %4 : vector<1x128xf32> to vector<8x128xf32>
      %33 = arith.addf %31, %32 : vector<8x128xf32>
      %cst_28 = arith.constant 0.000000e+00 : f32
      %34 = vector.broadcast %cst_28 : f32 to vector<8x128xf32>
      %35 = arith.maximumf %33, %34 : vector<8x128xf32>
      %36 = arith.truncf %35 : vector<8x128xf32> to vector<8x128xbf16>
      %c0_29 = arith.constant 0 : index
      %c0_30 = arith.constant 0 : index
      %37 = vector.load %arg10[%c0_29, %c0_30] : memref<8x128xbf16, #tpu.memory_space<vmem>>, vector<8x128xbf16>
      tpu.vector_store %arg10[%c0_29, %c0_30], %36 {strides = array<i32>} : memref<8x128xbf16, #tpu.memory_space<vmem>>, vector<8x128xbf16>,
    } else {
    }
    %c1_i32 = arith.constant 1 : i32
    %19 = arith.cmpi sgt, %0, %c1_i32 : i32
    %20 = arith.extui %19 : i1 to i32
    %c0_i32_18 = arith.constant 0 : i32
    %21 = arith.cmpi ne, %20, %c0_i32_18 : i32
    scf.if %21 {
      %c0_25 = arith.constant 0 : index
      %c0_26 = arith.constant 0 : index
      %30 = vector.load %arg10[%c0_25, %c0_26] : memref<8x128xbf16, #tpu.memory_space<vmem>>, vector<8x128xbf16>
      %cst_27 = arith.constant dense<0.000000e+00> : vector<8x128xf32>
      %31 = tpu.matmul %30, %3, %cst_27 {dimension_numbers = #tpu.dot_dimension_numbers<[1], [0], [0], [1], [0, 0, 1, 1], [], []>} : vector<8x128xbf16>, vector<128x128xbf16>, vector<8x128xf32> -> vector<8x128xf32>
      %32 = vector.broadcast %4 : vector<1x128xf32> to vector<8x128xf32>
      %33 = arith.addf %31, %32 : vector<8x128xf32>
      %cst_28 = arith.constant 0.000000e+00 : f32
      %34 = vector.broadcast %cst_28 : f32 to vector<8x128xf32>
      %35 = arith.maximumf %33, %34 : vector<8x128xf32>
      %36 = arith.truncf %35 : vector<8x128xf32> to vector<8x128xbf16>
      %c0_29 = arith.constant 0 : index
      %c0_30 = arith.constant 0 : index
      %37 = vector.load %arg10[%c0_29, %c0_30] : memref<8x128xbf16, #tpu.memory_space<vmem>>, vector<8x128xbf16>
      tpu.vector_store %arg10[%c0_29, %c0_30], %36 {strides = array<i32>} : memref<8x128xbf16, #tpu.memory_space<vmem>>, vector<8x128xbf16>,
    } else {
    }
    %c2_i32 = arith.constant 2 : i32
    %22 = arith.cmpi sgt, %0, %c2_i32 : i32
    %23 = arith.extui %22 : i1 to i32
    %c0_i32_19 = arith.constant 0 : i32
    %24 = arith.cmpi ne, %23, %c0_i32_19 : i32
    scf.if %24 {
      %c0_25 = arith.constant 0 : index
      %c0_26 = arith.constant 0 : index
      %30 = vector.load %arg10[%c0_25, %c0_26] : memref<8x128xbf16, #tpu.memory_space<vmem>>, vector<8x128xbf16>
      %cst_27 = arith.constant dense<0.000000e+00> : vector<8x128xf32>
      %31 = tpu.matmul %30, %3, %cst_27 {dimension_numbers = #tpu.dot_dimension_numbers<[1], [0], [0], [1], [0, 0, 1, 1], [], []>} : vector<8x128xbf16>, vector<128x128xbf16>, vector<8x128xf32> -> vector<8x128xf32>
      %32 = vector.broadcast %4 : vector<1x128xf32> to vector<8x128xf32>
      %33 = arith.addf %31, %32 : vector<8x128xf32>
      %cst_28 = arith.constant 0.000000e+00 : f32
      %34 = vector.broadcast %cst_28 : f32 to vector<8x128xf32>
      %35 = arith.maximumf %33, %34 : vector<8x128xf32>
      %36 = arith.truncf %35 : vector<8x128xf32> to vector<8x128xbf16>
      %c0_29 = arith.constant 0 : index
      %c0_30 = arith.constant 0 : index
      %37 = vector.load %arg10[%c0_29, %c0_30] : memref<8x128xbf16, #tpu.memory_space<vmem>>, vector<8x128xbf16>
      tpu.vector_store %arg10[%c0_29, %c0_30], %36 {strides = array<i32>} : memref<8x128xbf16, #tpu.memory_space<vmem>>, vector<8x128xbf16>,
    } else {
    }
    %c0_20 = arith.constant 0 : index
    %c0_21 = arith.constant 0 : index
    %25 = vector.load %arg10[%c0_20, %c0_21] : memref<8x128xbf16, #tpu.memory_space<vmem>>, vector<8x128xbf16>
    %cst_22 = arith.constant dense<0.000000e+00> : vector<8x128xf32>
    %26 = tpu.matmul %25, %5, %cst_22 {dimension_numbers = #tpu.dot_dimension_numbers<[1], [0], [0], [1], [0, 0, 1, 1], [], []>} : vector<8x128xbf16>, vector<128x128xbf16>, vector<8x128xf32> -> vector<8x128xf32>
    %27 = vector.broadcast %6 : vector<1x128xf32> to vector<8x128xf32>
    %28 = arith.addf %26, %27 : vector<8x128xf32>
    %c0_23 = arith.constant 0 : index
    %c0_24 = arith.constant 0 : index
    %29 = vector.load %arg9[%c0_23, %c0_24] : memref<8x128xf32, #tpu.memory_space<vmem>>, vector<8x128xf32>
    tpu.vector_store %arg9[%c0_23, %c0_24], %28 {strides = array<i32>} : memref<8x128xf32, #tpu.memory_space<vmem>>, vector<8x128xf32>,
    return
  }
  func.func @transform_0(%arg0: i32, %arg1: memref<1xi32, #tpu.memory_space<smem>>) -> (i32, i32) {
    %c0_i32 = arith.constant 0 : i32
    %c0_i32_0 = arith.constant 0 : i32
    return %arg0, %c0_i32 : i32, i32
  }
  func.func @transform_1(%arg0: i32, %arg1: memref<1xi32, #tpu.memory_space<smem>>) -> (i32, i32) {
    %c0_i32 = arith.constant 0 : i32
    %c0_i32_0 = arith.constant 0 : i32
    %c0_i32_1 = arith.constant 0 : i32
    return %c0_i32, %c0_i32_0 : i32, i32
  }
  func.func @transform_2(%arg0: i32, %arg1: memref<1xi32, #tpu.memory_space<smem>>) -> (i32, i32) {
    %c0_i32 = arith.constant 0 : i32
    %c0_i32_0 = arith.constant 0 : i32
    %c0_i32_1 = arith.constant 0 : i32
    return %c0_i32, %c0_i32_0 : i32, i32
  }
  func.func @transform_3(%arg0: i32, %arg1: memref<1xi32, #tpu.memory_space<smem>>) -> (i32, i32) {
    %c0_i32 = arith.constant 0 : i32
    %c0_i32_0 = arith.constant 0 : i32
    %c0_i32_1 = arith.constant 0 : i32
    return %c0_i32, %c0_i32_0 : i32, i32
  }
  func.func @transform_4(%arg0: i32, %arg1: memref<1xi32, #tpu.memory_space<smem>>) -> (i32, i32) {
    %c0_i32 = arith.constant 0 : i32
    %c0_i32_0 = arith.constant 0 : i32
    %c0_i32_1 = arith.constant 0 : i32
    return %c0_i32, %c0_i32_0 : i32, i32
  }
  func.func @transform_5(%arg0: i32, %arg1: memref<1xi32, #tpu.memory_space<smem>>) -> (i32, i32) {
    %c0_i32 = arith.constant 0 : i32
    %c0_i32_0 = arith.constant 0 : i32
    %c0_i32_1 = arith.constant 0 : i32
    return %c0_i32, %c0_i32_0 : i32, i32
  }
  func.func @transform_6(%arg0: i32, %arg1: memref<1xi32, #tpu.memory_space<smem>>) -> (i32, i32) {
    %c0_i32 = arith.constant 0 : i32
    %c0_i32_0 = arith.constant 0 : i32
    %c0_i32_1 = arith.constant 0 : i32
    return %c0_i32, %c0_i32_0 : i32, i32
  }
  func.func @transform_7(%arg0: i32, %arg1: memref<1xi32, #tpu.memory_space<smem>>) -> (i32, i32) {
    %c0_i32 = arith.constant 0 : i32
    %c0_i32_0 = arith.constant 0 : i32
    return %arg0, %c0_i32 : i32, i32
  }
}

</mosaic_0001>

<llo_original>
// kernel: _pallas_forward.1
$region0: #{_pallas_forward.1}
  #allocation0 [shape = 'u32[]', space=smem, size = 0x4, offset = 0x4, fixed_abs, tag = 'smem constant byte address 0x4 - core index']
  #allocation1 [shape = 'u32[144,128]{1,0:T(1,128)}', space=vmem, size = 0x12000, scoped, tag = 'internal scratch']
  #allocation2 [shape = 'bf16[8,128]{1,0:T(8,128)(2,1)}', space=vmem, size = 0x800, scoped, tag = 'scratch operand']
  #allocation3 [shape = 's32[1]{0}', space=sflag, size = 0x4, scoped, tag = 'scoped memory for _pallas_forward.1']
  #allocation4 [shape = 's32[1]{0:T(128)S(6)}', space=smem, size = 0x200, scoped, tag = 'prefetched SMEM operand 0']
  %s0 = inlined_call_operand.<no memory space> [shape: s32[1], index: 0, kind: input, shape index: {}]
  %s1 = inlined_call_operand.vmem [shape: f32[8,16], index: 1, kind: input, shape index: {}]
  %s2 = inlined_call_operand.hbm [shape: bf16[16,128], index: 2, kind: input, shape index: {}]
  %s3 = inlined_call_operand.vmem [shape: f32[1,128], index: 3, kind: input, shape index: {}]
  %s4 = inlined_call_operand.hbm [shape: bf16[128,128], index: 4, kind: input, shape index: {}]
  %s5 = inlined_call_operand.vmem [shape: f32[1,128], index: 5, kind: input, shape index: {}]
  %s6 = inlined_call_operand.hbm [shape: bf16[128,128], index: 6, kind: input, shape index: {}]
  %s7 = inlined_call_operand.vmem [shape: f32[1,128], index: 7, kind: input, shape index: {}]
  %s8 = inlined_call_operand.hbm [shape: f32[8,128], index: 8, kind: output, shape index: {}]
  %s9 = sld [smem:[#allocation0]]
  $region62: #{_pallas_forward.1} parent=0
    _
  %s11 = ssub.s32 1, %s9
  %s12 = scalar_select 0, %s11, %s9
  %13 = sst [smem:[#allocation4]] %s0
  $region1: #{_pallas_forward.1} parent=0
    #allocation5 [shape = 'u8[4096]{0}', space=vmem, size = 0x1000, scoped, tag = 'input window, operand 2, single buffered']
    #allocation6 [shape = 's32[1]{0}', space=sflag, size = 0x4, scoped, tag = 'scoped memory for _pallas_forward.1']
    #allocation7 [shape = 's32[1]{0}', space=sflag, size = 0x4, scoped, tag = 'scoped memory for _pallas_forward.1']
    #allocation8 [shape = 'u8[32768]{0}', space=vmem, size = 0x8000, scoped, tag = 'input window, operand 4, single buffered']
    #allocation9 [shape = 's32[1]{0}', space=sflag, size = 0x4, scoped, tag = 'scoped memory for _pallas_forward.1']
    #allocation10 [shape = 'u8[32768]{0}', space=vmem, size = 0x8000, scoped, tag = 'input window, operand 6, single buffered']
    #allocation11 [shape = 'u8[4096]{0}', space=vmem, size = 0x1000, scoped, tag = 'output window, operand 0, single buffered']
    %14 = vsyncpa [#allocation6], 0
    %15 = vsyncpa [#allocation9], 0
    %16 = vsyncpa [#allocation7], 0
    // Predicated region
    $region2: #{_pallas_forward.1} parent=1 // pred_check
      _
    $region3: #{_pallas_forward.1} parent=1 // pred_check_branch
      %18 = sbr.rel (0) target = $region5
    $region4: #{_pallas_forward.1} parent=1 // pred_region
      _
    $region5: #{_pallas_forward.1} parent=1 // pred_fallthru
      _
    // Predicated region
    $region6: #{_pallas_forward.1} parent=1 // pred_check
      _
    $region7: #{_pallas_forward.1} parent=1 // pred_check_branch
      %20 = sbr.rel (0) target = $region9
    $region8: #{_pallas_forward.1} parent=1 // pred_region
      %s22 = ssub.s32 128, 128
      %23 = vsyncadd [#allocation6], %s22
      %s24 = sshll.u32 [#allocation5], 4
      %s25 = int_to_ptr.vmem [resolvable:$true] %s24
      %30 = dma.hbm_to_vmem [thread:$0]  %s2, 128, %s25, [#allocation6], 64, 64, 4
    $region9: #{_pallas_forward.1} parent=1 // pred_fallthru
      _
    // Predicated region
    $region10: #{_pallas_forward.1} parent=1 // pred_check
      _
    $region11: #{_pallas_forward.1} parent=1 // pred_check_branch
      %32 = sbr.rel (0) target = $region13
    $region12: #{_pallas_forward.1} parent=1 // pred_region
      _
    $region13: #{_pallas_forward.1} parent=1 // pred_fallthru
      _
    // Predicated region
    $region14: #{_pallas_forward.1} parent=1 // pred_check
      _
    $region15: #{_pallas_forward.1} parent=1 // pred_check_branch
      %34 = sbr.rel (0) target = $region17
    $region16: #{_pallas_forward.1} parent=1 // pred_region
      %s36 = ssub.s32 1024, 1024
      %37 = vsyncadd [#allocation9], %s36
      %s38 = sshll.u32 [#allocation8], 4
      %s39 = int_to_ptr.vmem [resolvable:$true] %s38
      %44 = dma.hbm_to_vmem [thread:$0]  %s4, 1024, %s39, [#allocation9], 64, 64, 4
    $region17: #{_pallas_forward.1} parent=1 // pred_fallthru
      _
    // Predicated region
    $region18: #{_pallas_forward.1} parent=1 // pred_check
      _
    $region19: #{_pallas_forward.1} parent=1 // pred_check_branch
      %46 = sbr.rel (0) target = $region21
    $region20: #{_pallas_forward.1} parent=1 // pred_region
      _
    $region21: #{_pallas_forward.1} parent=1 // pred_fallthru
      _
    // Predicated region
    $region22: #{_pallas_forward.1} parent=1 // pred_check
      _
    $region23: #{_pallas_forward.1} parent=1 // pred_check_branch
      %48 = sbr.rel (0) target = $region25
    $region24: #{_pallas_forward.1} parent=1 // pred_region
      %s50 = ssub.s32 1024, 1024
      %51 = vsyncadd [#allocation9], %s50
      %s52 = sshll.u32 [#allocation10], 4
      %s53 = int_to_ptr.vmem [resolvable:$true] %s52
      %58 = dma.hbm_to_vmem [thread:$0]  %s6, 1024, %s53, [#allocation9], 64, 64, 4
    $region25: #{_pallas_forward.1} parent=1 // pred_fallthru
      _
    // Predicated region
    $region26: #{_pallas_forward.1} parent=1 // pred_check
      _
    $region27: #{_pallas_forward.1} parent=1 // pred_check_branch
      %60 = sbr.rel (0) target = $region29
    $region28: #{_pallas_forward.1} parent=1 // pred_region
      _
    $region29: #{_pallas_forward.1} parent=1 // pred_fallthru
      _
    // Predicated region
    $region30: #{_pallas_forward.1} parent=1 // pred_check
      _
    $region31: #{_pallas_forward.1} parent=1 // pred_check_branch
      %62 = sbr.rel (0) target = $region33
    $region32: #{_pallas_forward.1} parent=1 // pred_region
      %63 = dma.done [#allocation6], 128
    $region33: #{_pallas_forward.1} parent=1 // pred_fallthru
      _
    // Predicated region
    $region34: #{_pallas_forward.1} parent=1 // pred_check
      _
    $region35: #{_pallas_forward.1} parent=1 // pred_check_branch
      %65 = sbr.rel (0) target = $region37
    $region36: #{_pallas_forward.1} parent=1 // pred_region
      %66 = dma.done [#allocation9], 1024
    $region37: #{_pallas_forward.1} parent=1 // pred_fallthru
      _
    // Predicated region
    $region38: #{_pallas_forward.1} parent=1 // pred_check
      _
    $region39: #{_pallas_forward.1} parent=1 // pred_check_branch
      %68 = sbr.rel (0) target = $region41
    $region40: #{_pallas_forward.1} parent=1 // pred_region
      %69 = dma.done [#allocation9], 1024
    $region41: #{_pallas_forward.1} parent=1 // pred_fallthru
      _
    %s71 = sld [smem:[#allocation4]]
    %v72 = vld [vmem:[#allocation5] sm:$0xf]
    %v73 = vld [vmem:[#allocation5 + $0x4] sm:$0xf]
    %v74 = vld [vmem:[%s3] sm:$0x1]
    %v75 = vld [vmem:[#allocation8] sm:$0xf]
    %v76 = vld [vmem:[#allocation8 + $0x4] sm:$0xf]
    %v77 = vld [vmem:[#allocation8 + $0x8] sm:$0xf]
    %v78 = vld [vmem:[#allocation8 + $0xc] sm:$0xf]
    %v79 = vld [vmem:[#allocation8 + $0x10] sm:$0xf]
    %v80 = vld [vmem:[#allocation8 + $0x14] sm:$0xf]
    %v81 = vld [vmem:[#allocation8 + $0x18] sm:$0xf]
    %v82 = vld [vmem:[#allocation8 + $0x1c] sm:$0xf]
    %v83 = vld [vmem:[#allocation8 + $0x20] sm:$0xf]
    %v84 = vld [vmem:[#allocation8 + $0x24] sm:$0xf]
    %v85 = vld [vmem:[#allocation8 + $0x28] sm:$0xf]
    %v86 = vld [vmem:[#allocation8 + $0x2c] sm:$0xf]
    %v87 = vld [vmem:[#allocation8 + $0x30] sm:$0xf]
    %v88 = vld [vmem:[#allocation8 + $0x34] sm:$0xf]
    %v89 = vld [vmem:[#allocation8 + $0x38] sm:$0xf]
    %v90 = vld [vmem:[#allocation8 + $0x3c] sm:$0xf]
    %v91 = vld [vmem:[%s5] sm:$0x1]
    %v92 = vld [vmem:[#allocation10] sm:$0xf]
    %v93 = vld [vmem:[#allocation10 + $0x4] sm:$0xf]
    %v94 = vld [vmem:[#allocation10 + $0x8] sm:$0xf]
    %v95 = vld [vmem:[#allocation10 + $0xc] sm:$0xf]
    %v96 = vld [vmem:[#allocation10 + $0x10] sm:$0xf]
    %v97 = vld [vmem:[#allocation10 + $0x14] sm:$0xf]
    %v98 = vld [vmem:[#allocation10 + $0x18] sm:$0xf]
    %v99 = vld [vmem:[#allocation10 + $0x1c] sm:$0xf]
    %v100 = vld [vmem:[#allocation10 + $0x20] sm:$0xf]
    %v101 = vld [vmem:[#allocation10 + $0x24] sm:$0xf]
    %v102 = vld [vmem:[#allocation10 + $0x28] sm:$0xf]
    %v103 = vld [vmem:[#allocation10 + $0x2c] sm:$0xf]
    %v104 = vld [vmem:[#allocation10 + $0x30] sm:$0xf]
    %v105 = vld [vmem:[#allocation10 + $0x34] sm:$0xf]
    %v106 = vld [vmem:[#allocation10 + $0x38] sm:$0xf]
    %v107 = vld [vmem:[#allocation10 + $0x3c] sm:$0xf]
    %v108 = vld [vmem:[%s7] sm:$0x1]
    %v109 = vld [vmem:[%s1] sm:$0xff]
    %v110 = vpack.c.bf16 %v109, %v109
    %v112 = vlaneseq
    %v113 = vshrl.u32 %v112, 7
    %v114 = vsub.s32 0, %v113
    %v115 = vrot.slane %v74, %v114
    %v119 = vunpack.c.l.b16 %v72
    %v120 = vunpack.c.l.b16 %v73
    %v121 = vpack.c.b16 %v120, %v119
    %vm123 = vcmask 130048
    %v125 = vsel %vm123, %v110, 0
    %127 = vmatprep.subr.bf16.mxu0 0
    %128 = vmatpush1.bf16.msra.mxu0 %v121
    %129 = vmatprep.subr.bf16.mxu0 0
    %130 = vmatpush1.bf16.msra.mxu0 0
    %131 = vmatprep.subr.bf16.mxu0 0
    %132 = vmatpush1.bf16.msra.mxu0 0
    %133 = vmatprep.subr.bf16.mxu0 0
    %134 = vmatpush1.bf16.msra.mxu0 0
    %135 = vmatprep.subr.bf16.mxu0 0
    %136 = vmatpush1.bf16.msra.mxu0 0
    %137 = vmatprep.subr.bf16.mxu0 0
    %138 = vmatpush1.bf16.msra.mxu0 0
    %139 = vmatprep.subr.bf16.mxu0 0
    %140 = vmatpush1.bf16.msra.mxu0 0
    %141 = vmatprep.subr.bf16.mxu0 0
    %142 = vmatpush1.bf16.msra.mxu0 0
    %143 = vmatprep.subr.bf16.mxu0 0
    %144 = vmatpush1.bf16.msra.mxu0 0
    %145 = vmatprep.subr.bf16.mxu0 0
    %146 = vmatpush1.bf16.msra.mxu0 0
    %147 = vmatprep.subr.bf16.mxu0 0
    %148 = vmatpush1.bf16.msra.mxu0 0
    %149 = vmatprep.subr.bf16.mxu0 0
    %150 = vmatpush1.bf16.msra.mxu0 0
    %151 = vmatprep.subr.bf16.mxu0 0
    %152 = vmatpush1.bf16.msra.mxu0 0
    %153 = vmatprep.subr.bf16.mxu0 0
    %154 = vmatpush1.bf16.msra.mxu0 0
    %155 = vmatprep.subr.bf16.mxu0 0
    %156 = vmatpush1.bf16.msra.mxu0 0
    %157 = vmatprep.subr.bf16.mxu0 0
    %158 = vmatpush1.bf16.msra.mxu0 0
    %159 = vmatprep.mubr.bf16.mxu0 0
    %160 = vmatmul.mubr.bf16.gmra.mrb[0].mxu0 %v125
    %v161 = vpop.f32.mrb[0].mxu0
    %v162 = vadd.f32 %v115, %v161
    %v163 = vpop.f32.mrb[0].mxu0
    %v164 = vpop.f32.mrb[0].mxu0
    %v165 = vpop.f32.mrb[0].mxu0
    %166 = vdwg.mxu0
    %v167 = vmax.f32 %v162, 0.0
    %v168 = vpack.c.bf16 %v167, %v167
    %169 = vst [vmem:[#allocation2] sm:$0xf] %v168
    %p170 = scmp.gt.s32.totalorder %s71, 0
    // Predicated region
    $region42: #{_pallas_forward.1} parent=1 // pred_check
      %p171 = pneg %p170
    $region43: #{_pallas_forward.1} parent=1 // pred_check_branch
      %173 = sbr.rel (%p171) target = $region45
    $region44: #{_pallas_forward.1} parent=1 // pred_region
      %v174 = vld [vmem:[#allocation2] sm:$0xf]
      %v176 = vlaneseq
      %v177 = vshrl.u32 %v176, 7
      %v178 = vsub.s32 0, %v177
      %v179 = vrot.slane %v91, %v178
      %v197 = vunpack.c.l.b16 %v75
      %v198 = vunpack.c.l.b16 %v76
      %v199 = vunpack.c.l.b16 %v77
      %v200 = vunpack.c.l.b16 %v78
      %v201 = vunpack.c.l.b16 %v79
      %v202 = vunpack.c.l.b16 %v80
      %v203 = vunpack.c.l.b16 %v81
      %v204 = vunpack.c.l.b16 %v82
      %v205 = vunpack.c.l.b16 %v83
      %v206 = vunpack.c.l.b16 %v84
      %v207 = vunpack.c.l.b16 %v85
      %v208 = vunpack.c.l.b16 %v86
      %v209 = vunpack.c.l.b16 %v87
      %v210 = vunpack.c.l.b16 %v88
      %v211 = vunpack.c.l.b16 %v89
      %v212 = vunpack.c.l.b16 %v90
      %v213 = vpack.c.b16 %v198, %v197
      %v214 = vpack.c.b16 %v200, %v199
      %v215 = vpack.c.b16 %v202, %v201
      %v216 = vpack.c.b16 %v204, %v203
      %v217 = vpack.c.b16 %v206, %v205
      %v218 = vpack.c.b16 %v208, %v207
      %v219 = vpack.c.b16 %v210, %v209
      %v220 = vpack.c.b16 %v212, %v211
      %229 = vmatprep.subr.bf16.mxu0 0
      %230 = vmatpush1.bf16.msra.mxu0 %v213
      %231 = vmatprep.subr.bf16.mxu0 0
      %232 = vmatpush1.bf16.msra.mxu0 %v214
      %233 = vmatprep.subr.bf16.mxu0 0
      %234 = vmatpush1.bf16.msra.mxu0 %v215
      %235 = vmatprep.subr.bf16.mxu0 0
      %236 = vmatpush1.bf16.msra.mxu0 %v216
      %237 = vmatprep.subr.bf16.mxu0 0
      %238 = vmatpush1.bf16.msra.mxu0 %v217
      %239 = vmatprep.subr.bf16.mxu0 0
      %240 = vmatpush1.bf16.msra.mxu0 %v218
      %241 = vmatprep.subr.bf16.mxu0 0
      %242 = vmatpush1.bf16.msra.mxu0 %v219
      %243 = vmatprep.subr.bf16.mxu0 0
      %244 = vmatpush1.bf16.msra.mxu0 %v220
      %245 = vmatprep.subr.bf16.mxu0 0
      %246 = vmatpush1.bf16.msra.mxu0 0
      %247 = vmatprep.subr.bf16.mxu0 0
      %248 = vmatpush1.bf16.msra.mxu0 0
      %249 = vmatprep.subr.bf16.mxu0 0
      %250 = vmatpush1.bf16.msra.mxu0 0
      %251 = vmatprep.subr.bf16.mxu0 0
      %252 = vmatpush1.bf16.msra.mxu0 0
      %253 = vmatprep.subr.bf16.mxu0 0
      %254 = vmatpush1.bf16.msra.mxu0 0
      %255 = vmatprep.subr.bf16.mxu0 0
      %256 = vmatpush1.bf16.msra.mxu0 0
      %257 = vmatprep.subr.bf16.mxu0 0
      %258 = vmatpush1.bf16.msra.mxu0 0
      %259 = vmatprep.subr.bf16.mxu0 0
      %260 = vmatpush1.bf16.msra.mxu0 0
      %261 = vmatprep.mubr.bf16.mxu0 0
      %262 = vmatmul.mubr.bf16.gmra.mrb[0].mxu0 %v174
      %v263 = vpop.f32.mrb[0].mxu0
      %v264 = vadd.f32 %v179, %v263
      %v265 = vpop.f32.mrb[0].mxu0
      %v266 = vpop.f32.mrb[0].mxu0
      %v267 = vpop.f32.mrb[0].mxu0
      %268 = vdwg.mxu0
      %v269 = vmax.f32 %v264, 0.0
      %v270 = vpack.c.bf16 %v269, %v269
      %271 = vst [vmem:[#allocation2] sm:$0xf] %v270
    $region45: #{_pallas_forward.1} parent=1 // pred_fallthru
      _
    %p272 = scmp.gt.s32.totalorder %s71, 1
    // Predicated region
    $region46: #{_pallas_forward.1} parent=1 // pred_check
      %p273 = pneg %p272
    $region47: #{_pallas_forward.1} parent=1 // pred_check_branch
      %275 = sbr.rel (%p273) target = $region49
    $region48: #{_pallas_forward.1} parent=1 // pred_region
      %v276 = vld [vmem:[#allocation2] sm:$0xf]
      %v278 = vlaneseq
      %v279 = vshrl.u32 %v278, 7
      %v280 = vsub.s32 0, %v279
      %v281 = vrot.slane %v91, %v280
      %v299 = vunpack.c.l.b16 %v75
      %v300 = vunpack.c.l.b16 %v76
      %v301 = vunpack.c.l.b16 %v77
      %v302 = vunpack.c.l.b16 %v78
      %v303 = vunpack.c.l.b16 %v79
      %v304 = vunpack.c.l.b16 %v80
      %v305 = vunpack.c.l.b16 %v81
      %v306 = vunpack.c.l.b16 %v82
      %v307 = vunpack.c.l.b16 %v83
      %v308 = vunpack.c.l.b16 %v84
      %v309 = vunpack.c.l.b16 %v85
      %v310 = vunpack.c.l.b16 %v86
      %v311 = vunpack.c.l.b16 %v87
      %v312 = vunpack.c.l.b16 %v88
      %v313 = vunpack.c.l.b16 %v89
      %v314 = vunpack.c.l.b16 %v90
      %v315 = vpack.c.b16 %v300, %v299
      %v316 = vpack.c.b16 %v302, %v301
      %v317 = vpack.c.b16 %v304, %v303
      %v318 = vpack.c.b16 %v306, %v305
      %v319 = vpack.c.b16 %v308, %v307
      %v320 = vpack.c.b16 %v310, %v309
      %v321 = vpack.c.b16 %v312, %v311
      %v322 = vpack.c.b16 %v314, %v313
      %331 = vmatprep.subr.bf16.mxu0 0
      %332 = vmatpush1.bf16.msra.mxu0 %v315
      %333 = vmatprep.subr.bf16.mxu0 0
      %334 = vmatpush1.bf16.msra.mxu0 %v316
      %335 = vmatprep.subr.bf16.mxu0 0
      %336 = vmatpush1.bf16.msra.mxu0 %v317
      %337 = vmatprep.subr.bf16.mxu0 0
      %338 = vmatpush1.bf16.msra.mxu0 %v318
      %339 = vmatprep.subr.bf16.mxu0 0
      %340 = vmatpush1.bf16.msra.mxu0 %v319
      %341 = vmatprep.subr.bf16.mxu0 0
      %342 = vmatpush1.bf16.msra.mxu0 %v320
      %343 = vmatprep.subr.bf16.mxu0 0
      %344 = vmatpush1.bf16.msra.mxu0 %v321
      %345 = vmatprep.subr.bf16.mxu0 0
      %346 = vmatpush1.bf16.msra.mxu0 %v322
      %347 = vmatprep.subr.bf16.mxu0 0
      %348 = vmatpush1.bf16.msra.mxu0 0
      %349 = vmatprep.subr.bf16.mxu0 0
      %350 = vmatpush1.bf16.msra.mxu0 0
      %351 = vmatprep.subr.bf16.mxu0 0
      %352 = vmatpush1.bf16.msra.mxu0 0
      %353 = vmatprep.subr.bf16.mxu0 0
      %354 = vmatpush1.bf16.msra.mxu0 0
      %355 = vmatprep.subr.bf16.mxu0 0
      %356 = vmatpush1.bf16.msra.mxu0 0
      %357 = vmatprep.subr.bf16.mxu0 0
      %358 = vmatpush1.bf16.msra.mxu0 0
      %359 = vmatprep.subr.bf16.mxu0 0
      %360 = vmatpush1.bf16.msra.mxu0 0
      %361 = vmatprep.subr.bf16.mxu0 0
      %362 = vmatpush1.bf16.msra.mxu0 0
      %363 = vmatprep.mubr.bf16.mxu0 0
      %364 = vmatmul.mubr.bf16.gmra.mrb[0].mxu0 %v276
      %v365 = vpop.f32.mrb[0].mxu0
      %v366 = vadd.f32 %v281, %v365
      %v367 = vpop.f32.mrb[0].mxu0
      %v368 = vpop.f32.mrb[0].mxu0
      %v369 = vpop.f32.mrb[0].mxu0
      %370 = vdwg.mxu0
      %v371 = vmax.f32 %v366, 0.0
      %v372 = vpack.c.bf16 %v371, %v371
      %373 = vst [vmem:[#allocation2] sm:$0xf] %v372
    $region49: #{_pallas_forward.1} parent=1 // pred_fallthru
      _
    %p374 = scmp.gt.s32.totalorder %s71, 2
    // Predicated region
    $region50: #{_pallas_forward.1} parent=1 // pred_check
      %p375 = pneg %p374
    $region51: #{_pallas_forward.1} parent=1 // pred_check_branch
      %377 = sbr.rel (%p375) target = $region53
    $region52: #{_pallas_forward.1} parent=1 // pred_region
      %v378 = vld [vmem:[#allocation2] sm:$0xf]
      %v380 = vlaneseq
      %v381 = vshrl.u32 %v380, 7
      %v382 = vsub.s32 0, %v381
      %v383 = vrot.slane %v91, %v382
      %v401 = vunpack.c.l.b16 %v75
      %v402 = vunpack.c.l.b16 %v76
      %v403 = vunpack.c.l.b16 %v77
      %v404 = vunpack.c.l.b16 %v78
      %v405 = vunpack.c.l.b16 %v79
      %v406 = vunpack.c.l.b16 %v80
      %v407 = vunpack.c.l.b16 %v81
      %v408 = vunpack.c.l.b16 %v82
      %v409 = vunpack.c.l.b16 %v83
      %v410 = vunpack.c.l.b16 %v84
      %v411 = vunpack.c.l.b16 %v85
      %v412 = vunpack.c.l.b16 %v86
      %v413 = vunpack.c.l.b16 %v87
      %v414 = vunpack.c.l.b16 %v88
      %v415 = vunpack.c.l.b16 %v89
      %v416 = vunpack.c.l.b16 %v90
      %v417 = vpack.c.b16 %v402, %v401
      %v418 = vpack.c.b16 %v404, %v403
      %v419 = vpack.c.b16 %v406, %v405
      %v420 = vpack.c.b16 %v408, %v407
      %v421 = vpack.c.b16 %v410, %v409
      %v422 = vpack.c.b16 %v412, %v411
      %v423 = vpack.c.b16 %v414, %v413
      %v424 = vpack.c.b16 %v416, %v415
      %433 = vmatprep.subr.bf16.mxu0 0
      %434 = vmatpush1.bf16.msra.mxu0 %v417
      %435 = vmatprep.subr.bf16.mxu0 0
      %436 = vmatpush1.bf16.msra.mxu0 %v418
      %437 = vmatprep.subr.bf16.mxu0 0
      %438 = vmatpush1.bf16.msra.mxu0 %v419
      %439 = vmatprep.subr.bf16.mxu0 0
      %440 = vmatpush1.bf16.msra.mxu0 %v420
      %441 = vmatprep.subr.bf16.mxu0 0
      %442 = vmatpush1.bf16.msra.mxu0 %v421
      %443 = vmatprep.subr.bf16.mxu0 0
      %444 = vmatpush1.bf16.msra.mxu0 %v422
      %445 = vmatprep.subr.bf16.mxu0 0
      %446 = vmatpush1.bf16.msra.mxu0 %v423
      %447 = vmatprep.subr.bf16.mxu0 0
      %448 = vmatpush1.bf16.msra.mxu0 %v424
      %449 = vmatprep.subr.bf16.mxu0 0
      %450 = vmatpush1.bf16.msra.mxu0 0
      %451 = vmatprep.subr.bf16.mxu0 0
      %452 = vmatpush1.bf16.msra.mxu0 0
      %453 = vmatprep.subr.bf16.mxu0 0
      %454 = vmatpush1.bf16.msra.mxu0 0
      %455 = vmatprep.subr.bf16.mxu0 0
      %456 = vmatpush1.bf16.msra.mxu0 0
      %457 = vmatprep.subr.bf16.mxu0 0
      %458 = vmatpush1.bf16.msra.mxu0 0
      %459 = vmatprep.subr.bf16.mxu0 0
      %460 = vmatpush1.bf16.msra.mxu0 0
      %461 = vmatprep.subr.bf16.mxu0 0
      %462 = vmatpush1.bf16.msra.mxu0 0
      %463 = vmatprep.subr.bf16.mxu0 0
      %464 = vmatpush1.bf16.msra.mxu0 0
      %465 = vmatprep.mubr.bf16.mxu0 0
      %466 = vmatmul.mubr.bf16.gmra.mrb[0].mxu0 %v378
      %v467 = vpop.f32.mrb[0].mxu0
      %v468 = vadd.f32 %v383, %v467
      %v469 = vpop.f32.mrb[0].mxu0
      %v470 = vpop.f32.mrb[0].mxu0
      %v471 = vpop.f32.mrb[0].mxu0
      %472 = vdwg.mxu0
      %v473 = vmax.f32 %v468, 0.0
      %v474 = vpack.c.bf16 %v473, %v473
      %475 = vst [vmem:[#allocation2] sm:$0xf] %v474
    $region53: #{_pallas_forward.1} parent=1 // pred_fallthru
      _
    %v476 = vld [vmem:[#allocation2] sm:$0xf]
    %v478 = vlaneseq
    %v479 = vshrl.u32 %v478, 7
    %v480 = vsub.s32 0, %v479
    %v481 = vrot.slane %v108, %v480
    %v499 = vunpack.c.l.b16 %v92
    %v500 = vunpack.c.l.b16 %v93
    %v501 = vunpack.c.l.b16 %v94
    %v502 = vunpack.c.l.b16 %v95
    %v503 = vunpack.c.l.b16 %v96
    %v504 = vunpack.c.l.b16 %v97
    %v505 = vunpack.c.l.b16 %v98
    %v506 = vunpack.c.l.b16 %v99
    %v507 = vunpack.c.l.b16 %v100
    %v508 = vunpack.c.l.b16 %v101
    %v509 = vunpack.c.l.b16 %v102
    %v510 = vunpack.c.l.b16 %v103
    %v511 = vunpack.c.l.b16 %v104
    %v512 = vunpack.c.l.b16 %v105
    %v513 = vunpack.c.l.b16 %v106
    %v514 = vunpack.c.l.b16 %v107
    %v515 = vpack.c.b16 %v500, %v499
    %v516 = vpack.c.b16 %v502, %v501
    %v517 = vpack.c.b16 %v504, %v503
    %v518 = vpack.c.b16 %v506, %v505
    %v519 = vpack.c.b16 %v508, %v507
    %v520 = vpack.c.b16 %v510, %v509
    %v521 = vpack.c.b16 %v512, %v511
    %v522 = vpack.c.b16 %v514, %v513
    %531 = vmatprep.subr.bf16.mxu0 0
    %532 = vmatpush1.bf16.msra.mxu0 %v515
    %533 = vmatprep.subr.bf16.mxu0 0
    %534 = vmatpush1.bf16.msra.mxu0 %v516
    %535 = vmatprep.subr.bf16.mxu0 0
    %536 = vmatpush1.bf16.msra.mxu0 %v517
    %537 = vmatprep.subr.bf16.mxu0 0
    %538 = vmatpush1.bf16.msra.mxu0 %v518
    %539 = vmatprep.subr.bf16.mxu0 0
    %540 = vmatpush1.bf16.msra.mxu0 %v519
    %541 = vmatprep.subr.bf16.mxu0 0
    %542 = vmatpush1.bf16.msra.mxu0 %v520
    %543 = vmatprep.subr.bf16.mxu0 0
    %544 = vmatpush1.bf16.msra.mxu0 %v521
    %545 = vmatprep.subr.bf16.mxu0 0
    %546 = vmatpush1.bf16.msra.mxu0 %v522
    %547 = vmatprep.subr.bf16.mxu0 0
    %548 = vmatpush1.bf16.msra.mxu0 0
    %549 = vmatprep.subr.bf16.mxu0 0
    %550 = vmatpush1.bf16.msra.mxu0 0
    %551 = vmatprep.subr.bf16.mxu0 0
    %552 = vmatpush1.bf16.msra.mxu0 0
    %553 = vmatprep.subr.bf16.mxu0 0
    %554 = vmatpush1.bf16.msra.mxu0 0
    %555 = vmatprep.subr.bf16.mxu0 0
    %556 = vmatpush1.bf16.msra.mxu0 0
    %557 = vmatprep.subr.bf16.mxu0 0
    %558 = vmatpush1.bf16.msra.mxu0 0
    %559 = vmatprep.subr.bf16.mxu0 0
    %560 = vmatpush1.bf16.msra.mxu0 0
    %561 = vmatprep.subr.bf16.mxu0 0
    %562 = vmatpush1.bf16.msra.mxu0 0
    %563 = vmatprep.mubr.bf16.mxu0 0
    %564 = vmatmul.mubr.bf16.gmra.mrb[0].mxu0 %v476
    %v565 = vpop.f32.mrb[0].mxu0
    %v566 = vadd.f32 %v481, %v565
    %v567 = vpop.f32.mrb[0].mxu0
    %v568 = vpop.f32.mrb[0].mxu0
    %v569 = vpop.f32.mrb[0].mxu0
    %570 = vdwg.mxu0
    %571 = vst [vmem:[#allocation11] sm:$0xff] %v566
    // Predicated region
    $region54: #{_pallas_forward.1} parent=1 // pred_check
      _
    $region55: #{_pallas_forward.1} parent=1 // pred_check_branch
      %573 = sbr.rel (0) target = $region57
    $region56: #{_pallas_forward.1} parent=1 // pred_region
      %s575 = ssub.s32 128, 128
      %576 = vsyncadd [#allocation7], %s575
      %s578 = sshll.u32 [#allocation11], 4
      %s579 = int_to_ptr.vmem [resolvable:$true] %s578
      %581 = dma.vmem_to_hbm [thread:$0]  %s579, 128, %s8, [#allocation7]
    $region57: #{_pallas_forward.1} parent=1 // pred_fallthru
      _
    // Predicated region
    $region58: #{_pallas_forward.1} parent=1 // pred_check
      _
    $region59: #{_pallas_forward.1} parent=1 // pred_check_branch
      %583 = sbr.rel (0) target = $region61
    $region60: #{_pallas_forward.1} parent=1 // pred_region
      %584 = dma.done [#allocation7], 128
    $region61: #{_pallas_forward.1} parent=1 // pred_fallthru
      _
    %585 = vsyncpa [#allocation6], 1
    %586 = vsyncpa [#allocation9], 1
    %587 = vsyncpa [#allocation7], 1

</llo_original>
